<compile_context>
chip_gen: v5e
topology: v5e:2x2
jax: 0.10.0
libtpu: 0.0.40
codegen_flags: <defaults>
</compile_context>

<pallas_src>
import functools

import jax
import jax.numpy as jnp
from jax.experimental import pallas as pl
from jax.experimental.pallas import tpu as pltpu


# ----------------------------------------------------------------------------
# Single-pass fused kernel: pool + MLP + scale on one (Bt, C, HW) tile.
# ----------------------------------------------------------------------------
def _se_fused_kernel(x_ref, w1t_ref, b1_ref, w2t_ref, b2_ref, o_ref):
    # x_ref: (Bt, C, HW); weights are f32; 1/(H*W) is folded into w1t.
    pooled = jnp.sum(x_ref[...].astype(jnp.float32), axis=-1)            # (Bt, C) spatial sums
    h = jnp.dot(pooled, w1t_ref[...], preferred_element_type=jnp.float32) + b1_ref[...]
    h = jnp.maximum(h, 0.0)                                              # ReLU
    y = jnp.dot(h, w2t_ref[...], preferred_element_type=jnp.float32) + b2_ref[...]
    y = jax.nn.sigmoid(y)                                                # (Bt, C)
    o_ref[...] = x_ref[...] * y.astype(o_ref.dtype)[:, :, None]


# ----------------------------------------------------------------------------
# Two-pass fallback kernels (used when one batch element overflows the budget).
# ----------------------------------------------------------------------------
def _pool_gate_kernel(x_ref, w1t_ref, b1_ref, w2t_ref, b2_ref, gate_ref, acc_ref,
                      *, hw_total):
    j = pl.program_id(1)                       # spatial-tile axis ("arbitrary")

    @pl.when(j == 0)
    def _():
        acc_ref[...] = jnp.zeros_like(acc_ref)

    x = x_ref[...]                             # (Bt, C, hw_tile)
    hw_tile = x.shape[-1]
    # Mask lanes beyond the true H*W (partial trailing block contains garbage).
    lane = jax.lax.broadcasted_iota(jnp.int32, x.shape, 2)
    valid = (j * hw_tile + lane) < hw_total
    xf = jnp.where(valid, x.astype(jnp.float32), 0.0)
    acc_ref[...] += jnp.sum(xf, axis=-1)

    @pl.when(j == pl.num_programs(1) - 1)
    def _():
        pooled = acc_ref[...]                  # spatial sums; 1/(H*W) folded into w1t
        h = jnp.dot(pooled, w1t_ref[...], preferred_element_type=jnp.float32) + b1_ref[...]
        h = jnp.maximum(h, 0.0)
        y = jnp.dot(h, w2t_ref[...], preferred_element_type=jnp.float32) + b2_ref[...]
        gate_ref[...] = jax.nn.sigmoid(y)


def _scale_kernel(x_ref, gate_ref, o_ref):
    o_ref[...] = x_ref[...] * gate_ref[...].astype(o_ref.dtype)[:, :, None]


# ----------------------------------------------------------------------------
# Budgets / wrapper
# ----------------------------------------------------------------------------
def _tpu_budgets():
    """Return (max_block_bytes, vmem_limit_clamp) based on the local TPU."""
    try:
        cap = int(pltpu.get_tpu_info().vmem_capacity_bytes)
    except Exception:
        # Unknown hardware: conservative block size, v7x-safe VMEM clamp.
        return 4 << 20, 48 << 20
    if cap <= (64 << 20):
        # v7x-class: 64 MiB VMEM per TensorCore but very high HBM bandwidth ->
        # larger blocks amortize per-step overhead; keep headroom below physical.
        return 8 << 20, cap * 3 // 4          # 8 MiB blocks, ~48 MiB limit
    # v5e / v6e class: 128 MiB VMEM; 4 MiB blocks already reach ~85% of roofline.
    return 4 << 20, cap * 3 // 4              # 4 MiB blocks, ~96 MiB limit


def _se_single_pass(x2, w1t, b1r, w2t, b2r, max_block_bytes, vmem_clamp,
                    itemsize, weight_bytes):
    B, C, HW = x2.shape
    Cr = w1t.shape[1]
    per_batch_bytes = C * HW * itemsize

    # Largest batch tile within the block budget; Bt need NOT divide B.
    bt = max(1, min(B, max_block_bytes // max(1, per_batch_bytes)))
    # Prefer >= 4 grid steps (>= 2 pipelined steps per TensorCore on v7x) as
    # long as the block stays reasonably sized.
    bt_for_steps = -(-B // 4)
    if bt_for_steps < bt and bt_for_steps * per_batch_bytes >= (512 << 10):
        bt = bt_for_steps
    grid_b = -(-B // bt)

    block_bytes = bt * per_batch_bytes
    vmem_limit = int(min(max(4 * block_bytes + 4 * weight_bytes + (2 << 20), 8 << 20),
                         vmem_clamp))

    cost = pl.CostEstimate(
        flops=2 * B * C * HW + 4 * B * C * Cr,      # pool + scale + two tiny FCs
        transcendentals=B * C,                      # sigmoid
        bytes_accessed=2 * B * C * HW * itemsize + weight_bytes,
    )

    return pl.pallas_call(
        _se_fused_kernel,
        out_shape=jax.ShapeDtypeStruct((B, C, HW), x2.dtype),
        grid_spec=pltpu.PrefetchScalarGridSpec(
            num_scalar_prefetch=0,
            grid=(grid_b,),
            in_specs=[
                pl.BlockSpec((bt, C, HW), lambda i: (i, 0, 0)),   # x tile
                pl.BlockSpec((C, Cr), lambda i: (0, 0)),          # fc1 weight^T (with 1/HW)
                pl.BlockSpec((1, Cr), lambda i: (0, 0)),          # fc1 bias
                pl.BlockSpec((Cr, C), lambda i: (0, 0)),          # fc2 weight^T
                pl.BlockSpec((1, C), lambda i: (0, 0)),           # fc2 bias
            ],
            out_specs=pl.BlockSpec((bt, C, HW), lambda i: (i, 0, 0)),
        ),
        compiler_params=pltpu.CompilerParams(
            dimension_semantics=("parallel",),
            vmem_limit_bytes=vmem_limit,
        ),
        cost_estimate=cost,
    )(x2, w1t, b1r, w2t, b2r)


def _se_two_pass(x2, w1t, b1r, w2t, b2r, max_block_bytes, vmem_clamp, itemsize):
    B, C, HW = x2.shape
    Cr = w1t.shape[1]
    weight_bytes = (2 * C * Cr + C + Cr) * 4

    # Batch tile: full B when small (full-dim block is always legal), else a
    # multiple of 8 so the 2-D (bt, C) gate blocks satisfy sublane tiling.
    bt = B if B <= 8 else 8
    # Spatial tile: multiple of 128 sized to the block budget (or full HW).
    hw_tile = (max_block_bytes // max(1, bt * C * itemsize)) // 128 * 128
    hw_tile = max(128, hw_tile)
    if hw_tile >= HW:
        hw_tile = HW
    nb = -(-B // bt)
    nhw = -(-HW // hw_tile)

    block_bytes = bt * C * hw_tile * itemsize
    vmem_limit = int(min(max(6 * block_bytes + 4 * weight_bytes + (2 << 20), 8 << 20),
                         vmem_clamp))

    # Pass 1: pooled sums accumulated across spatial tiles, then the tiny MLP.
    gate = pl.pallas_call(
        functools.partial(_pool_gate_kernel, hw_total=HW),
        out_shape=jax.ShapeDtypeStruct((B, C), jnp.float32),
        grid_spec=pltpu.PrefetchScalarGridSpec(
            num_scalar_prefetch=0,
            grid=(nb, nhw),
            in_specs=[
                pl.BlockSpec((bt, C, hw_tile), lambda b, j: (b, 0, j)),
                pl.BlockSpec((C, Cr), lambda b, j: (0, 0)),
                pl.BlockSpec((1, Cr), lambda b, j: (0, 0)),
                pl.BlockSpec((Cr, C), lambda b, j: (0, 0)),
                pl.BlockSpec((1, C), lambda b, j: (0, 0)),
            ],
            out_specs=pl.BlockSpec((bt, C), lambda b, j: (b, 0)),
            scratch_shapes=[pltpu.VMEM((bt, C), jnp.float32)],
        ),
        compiler_params=pltpu.CompilerParams(
            dimension_semantics=("parallel", "arbitrary"),
            vmem_limit_bytes=vmem_limit,
        ),
    )(x2, w1t, b1r, w2t, b2r)

    # Pass 2: freely tiled channel-wise rescale.
    out = pl.pallas_call(
        _scale_kernel,
        out_shape=jax.ShapeDtypeStruct((B, C, HW), x2.dtype),
        grid_spec=pltpu.PrefetchScalarGridSpec(
            num_scalar_prefetch=0,
            grid=(nb, nhw),
            in_specs=[
                pl.BlockSpec((bt, C, hw_tile), lambda b, j: (b, 0, j)),
                pl.BlockSpec((bt, C), lambda b, j: (b, 0)),
            ],
            out_specs=pl.BlockSpec((bt, C, hw_tile), lambda b, j: (b, 0, j)),
        ),
        compiler_params=pltpu.CompilerParams(
            dimension_semantics=("parallel", "parallel"),
            vmem_limit_bytes=vmem_limit,
        ),
    )(x2, gate)
    return out


def se_layer(x, w1, b1, w2, b2, *, block_bytes=None, force_two_pass=False):
    """x: (B, C, H, W). PyTorch Linear layout: w1 (C//r, C), b1 (C//r,), w2 (C, C//r), b2 (C,)."""
    B, C, H, W = x.shape
    Cr = w1.shape[0]
    HW = H * W
    itemsize = jnp.dtype(x.dtype).itemsize

    max_block_bytes, vmem_clamp = _tpu_budgets()
    if block_bytes is not None:
        max_block_bytes = int(block_bytes)

    # Free reshape (collapse of contiguous trailing dims): no extra HBM pass.
    x2 = x.reshape(B, C, HW)

    # f32 weight prep; fold the 1/(H*W) pooling scale into the first FC weight.
    inv_hw = 1.0 / float(HW)
    w1t = (w1.astype(jnp.float32) * inv_hw).T      # (C, Cr)
    w2t = w2.astype(jnp.float32).T                 # (Cr, C)
    b1r = b1.reshape(1, Cr).astype(jnp.float32)
    b2r = b2.reshape(1, C).astype(jnp.float32)

    per_batch_bytes = C * HW * itemsize
    weight_bytes = (2 * C * Cr + C + Cr) * 4
    single_pass_need = 4 * per_batch_bytes + 4 * weight_bytes + (2 << 20)

    if force_two_pass or single_pass_need > vmem_clamp:
        out = _se_two_pass(x2, w1t, b1r, w2t, b2r, max_block_bytes, vmem_clamp, itemsize)
    else:
        out = _se_single_pass(x2, w1t, b1r, w2t, b2r, max_block_bytes, vmem_clamp,
                              itemsize, weight_bytes)
    return out.reshape(B, C, H, W)


def se_ref(x, w1, b1, w2, b2):
    # Pure-JAX reference matching the PyTorch forward.
    y = x.mean(axis=(2, 3))                              # (B, C)
    y = jnp.maximum(y @ w1.T + b1, 0.0)                  # (B, C//r)
    y = jax.nn.sigmoid(y @ w2.T + b2)                    # (B, C)
    return x * y[:, :, None, None]


if __name__ == "__main__":
    # Shapes consistent with the module: channel=32, reduction=16 -> hidden=2.
    B, C, H, W = 2, 32, 16, 16
    reduction = 16
    Cr = C // reduction

    key = jax.random.PRNGKey(0)
    kx, k1, k2, k3, k4, kx2 = jax.random.split(key, 6)

    x = jax.random.normal(kx, (B, C, H, W), dtype=jnp.float32)

    # Deterministic parameter init (PyTorch Linear shapes: W is (out, in)).
    bound1 = 1.0 / (C ** 0.5)
    bound2 = 1.0 / (Cr ** 0.5)
    w1 = jax.random.uniform(k1, (Cr, C), jnp.float32, -bound1, bound1)
    b1 = jax.random.uniform(k2, (Cr,), jnp.float32, -bound1, bound1)
    w2 = jax.random.uniform(k3, (C, Cr), jnp.float32, -bound2, bound2)
    b2 = jax.random.uniform(k4, (C,), jnp.float32, -bound2, bound2)

    # Test 1: primary single-pass fused kernel.
    out = se_layer(x, w1, b1, w2, b2)
    jax.block_until_ready(out)
    ref = se_ref(x, w1, b1, w2, b2)
    assert out.shape == (B, C, H, W)
    assert jnp.allclose(out, ref, atol=1e-5, rtol=1e-5), "single-pass mismatch vs reference"

    # Test 2: force the two-pass fallback (HW not a multiple of 128 exercises
    # spatial accumulation + tail-lane masking) and check it too.
    B2, H2, W2 = 3, 12, 12
    x_b = jax.random.normal(kx2, (B2, C, H2, W2), dtype=jnp.float32)
    out_b = se_layer(x_b, w1, b1, w2, b2, block_bytes=16 << 10, force_two_pass=True)
    jax.block_until_ready(out_b)
    ref_b = se_ref(x_b, w1, b1, w2, b2)
    assert out_b.shape == (B2, C, H2, W2)
    assert jnp.allclose(out_b, ref_b, atol=1e-5, rtol=1e-5), "two-pass mismatch vs reference"

    print("KERNEL_OK")
</pallas_src>

<mosaic_0001>
module attributes {stable_mosaic.version = 11 : i64} {
  func.func @_se_fused_kernel(%arg0: i32, %arg1: memref<2x32x256xf32, #tpu.memory_space<vmem>>, %arg2: memref<32x2xf32, #tpu.memory_space<vmem>>, %arg3: memref<1x2xf32, #tpu.memory_space<vmem>>, %arg4: memref<2x32xf32, #tpu.memory_space<vmem>>, %arg5: memref<1x32xf32, #tpu.memory_space<vmem>>, %arg6: memref<2x32x256xf32, #tpu.memory_space<vmem>>) attributes {dimension_semantics = [#tpu.dimension_semantics<parallel>], iteration_bounds = array<i64: 1>, scalar_prefetch = 0 : i64, scratch_operands = 0 : i64, tpu.core_type = #tpu.core_type<tc>, window_params = [{transform_indices = @transform_0, window_bounds = array<i64: 2, 32, 256>}, {pipeline_mode = #tpu.pipeline_mode<synchronous>, transform_indices = @transform_1, window_bounds = array<i64: 32, 2>}, {pipeline_mode = #tpu.pipeline_mode<synchronous>, transform_indices = @transform_2, window_bounds = array<i64: 1, 2>}, {pipeline_mode = #tpu.pipeline_mode<synchronous>, transform_indices = @transform_3, window_bounds = array<i64: 2, 32>}, {pipeline_mode = #tpu.pipeline_mode<synchronous>, transform_indices = @transform_4, window_bounds = array<i64: 1, 32>}, {transform_indices = @transform_5, window_bounds = array<i64: 2, 32, 256>}]} {
    %c0 = arith.constant 0 : index
    %c0_0 = arith.constant 0 : index
    %c0_1 = arith.constant 0 : index
    %0 = vector.load %arg1[%c0, %c0_0, %c0_1] : memref<2x32x256xf32, #tpu.memory_space<vmem>>, vector<2x32x256xf32>
    %cst = arith.constant dense<0.000000e+00> : vector<2x32xf32>
    %1 = vector.multi_reduction <add>, %0, %cst [2] : vector<2x32x256xf32> to vector<2x32xf32>
    %c0_2 = arith.constant 0 : index
    %c0_3 = arith.constant 0 : index
    %2 = vector.load %arg2[%c0_2, %c0_3] : memref<32x2xf32, #tpu.memory_space<vmem>>, vector<32x2xf32>
    %cst_4 = arith.constant dense<0.000000e+00> : vector<2x2xf32>
    %3 = tpu.matmul %1, %2, %cst_4 {dimension_numbers = #tpu.dot_dimension_numbers<[1], [0], [0], [1], [0, 0, 1, 1], [], []>} : vector<2x32xf32>, vector<32x2xf32>, vector<2x2xf32> -> vector<2x2xf32>
    %c0_5 = arith.constant 0 : index
    %c0_6 = arith.constant 0 : index
    %4 = vector.load %arg3[%c0_5, %c0_6] : memref<1x2xf32, #tpu.memory_space<vmem>>, vector<1x2xf32>
    %5 = vector.broadcast %4 : vector<1x2xf32> to vector<2x2xf32>
    %6 = arith.addf %3, %5 : vector<2x2xf32>
    %cst_7 = arith.constant 0.000000e+00 : f32
    %7 = vector.broadcast %cst_7 : f32 to vector<2x2xf32>
    %8 = arith.maximumf %6, %7 : vector<2x2xf32>
    %c0_8 = arith.constant 0 : index
    %c0_9 = arith.constant 0 : index
    %9 = vector.load %arg4[%c0_8, %c0_9] : memref<2x32xf32, #tpu.memory_space<vmem>>, vector<2x32xf32>
    %cst_10 = arith.constant dense<0.000000e+00> : vector<2x32xf32>
    %10 = tpu.matmul %8, %9, %cst_10 {dimension_numbers = #tpu.dot_dimension_numbers<[1], [0], [0], [1], [0, 0, 1, 1], [], []>} : vector<2x2xf32>, vector<2x32xf32>, vector<2x32xf32> -> vector<2x32xf32>
    %c0_11 = arith.constant 0 : index
    %c0_12 = arith.constant 0 : index
    %11 = vector.load %arg5[%c0_11, %c0_12] : memref<1x32xf32, #tpu.memory_space<vmem>>, vector<1x32xf32>
    %12 = vector.broadcast %11 : vector<1x32xf32> to vector<2x32xf32>
    %13 = arith.addf %10, %12 : vector<2x32xf32>
    %14 = arith.negf %13 : vector<2x32xf32>
    %15 = math.exp %14 : vector<2x32xf32>
    %cst_13 = arith.constant 1.000000e+00 : f32
    %16 = vector.broadcast %cst_13 : f32 to vector<2x32xf32>
    %17 = arith.addf %16, %15 : vector<2x32xf32>
    %18 = arith.divf %16, %17 : vector<2x32xf32>
    %c0_14 = arith.constant 0 : index
    %c0_15 = arith.constant 0 : index
    %c0_16 = arith.constant 0 : index
    %19 = vector.load %arg1[%c0_14, %c0_15, %c0_16] : memref<2x32x256xf32, #tpu.memory_space<vmem>>, vector<2x32x256xf32>
    %20 = vector.shape_cast %18 : vector<2x32xf32> to vector<2x32x1xf32>
    %21 = vector.broadcast %20 : vector<2x32x1xf32> to vector<2x32x256xf32>
    %22 = arith.mulf %19, %21 : vector<2x32x256xf32>
    %c0_17 = arith.constant 0 : index
    %c0_18 = arith.constant 0 : index
    %c0_19 = arith.constant 0 : index
    %23 = vector.load %arg6[%c0_17, %c0_18, %c0_19] : memref<2x32x256xf32, #tpu.memory_space<vmem>>, vector<2x32x256xf32>
    tpu.vector_store %arg6[%c0_17, %c0_18, %c0_19], %22 {strides = array<i32>} : memref<2x32x256xf32, #tpu.memory_space<vmem>>, vector<2x32x256xf32>,
    return
  }
  func.func @transform_0(%arg0: i32) -> (i32, i32, i32) {
    %c0_i32 = arith.constant 0 : i32
    %c0_i32_0 = arith.constant 0 : i32
    %c0_i32_1 = arith.constant 0 : i32
    return %arg0, %c0_i32, %c0_i32_0 : i32, i32, i32
  }
  func.func @transform_1(%arg0: i32) -> (i32, i32) {
    %c0_i32 = arith.constant 0 : i32
    %c0_i32_0 = arith.constant 0 : i32
    %c0_i32_1 = arith.constant 0 : i32
    return %c0_i32, %c0_i32_0 : i32, i32
  }
  func.func @transform_2(%arg0: i32) -> (i32, i32) {
    %c0_i32 = arith.constant 0 : i32
    %c0_i32_0 = arith.constant 0 : i32
    %c0_i32_1 = arith.constant 0 : i32
    return %c0_i32, %c0_i32_0 : i32, i32
  }
  func.func @transform_3(%arg0: i32) -> (i32, i32) {
    %c0_i32 = arith.constant 0 : i32
    %c0_i32_0 = arith.constant 0 : i32
    %c0_i32_1 = arith.constant 0 : i32
    return %c0_i32, %c0_i32_0 : i32, i32
  }
  func.func @transform_4(%arg0: i32) -> (i32, i32) {
    %c0_i32 = arith.constant 0 : i32
    %c0_i32_0 = arith.constant 0 : i32
    %c0_i32_1 = arith.constant 0 : i32
    return %c0_i32, %c0_i32_0 : i32, i32
  }
  func.func @transform_5(%arg0: i32) -> (i32, i32, i32) {
    %c0_i32 = arith.constant 0 : i32
    %c0_i32_0 = arith.constant 0 : i32
    %c0_i32_1 = arith.constant 0 : i32
    return %arg0, %c0_i32, %c0_i32_0 : i32, i32, i32
  }
}

</mosaic_0001>

<llo_original>
// kernel: tpu_custom_call.1
$region0: #{tpu_custom_call.1}
  #allocation0 [shape = 'u32[]', space=smem, size = 0x4, offset = 0x4, fixed_abs, tag = 'smem constant byte address 0x4 - core index']
  #allocation1 [shape = 'u32[72,128]{1,0:T(1,128)}', space=vmem, size = 0x9000, scoped, tag = 'internal scratch']
  %s0 = inlined_call_operand.hbm [shape: f32[2,32,256], index: 0, kind: input, shape index: {}]
  %s1 = inlined_call_operand.vmem [shape: f32[32,2], index: 1, kind: input, shape index: {}]
  %s2 = inlined_call_operand.vmem [shape: f32[1,2], index: 2, kind: input, shape index: {}]
  %s3 = inlined_call_operand.vmem [shape: f32[2,32], index: 3, kind: input, shape index: {}]
  %s4 = inlined_call_operand.vmem [shape: f32[1,32], index: 4, kind: input, shape index: {}]
  %s5 = inlined_call_operand.hbm [shape: f32[2,32,256], index: 5, kind: output, shape index: {}]
  %s6 = sld [smem:[#allocation0]]
  $region34: #{tpu_custom_call.1} parent=0
    _
  %s8 = ssub.s32 1, %s6
  %s9 = scalar_select 0, %s8, %s6
  $region1: #{tpu_custom_call.1} parent=0
    #allocation2 [shape = 'u8[65536]{0}', space=vmem, size = 0x10000, scoped, tag = 'input window, operand 0, single buffered']
    #allocation3 [shape = 's32[1]{0}', space=sflag, size = 0x4, scoped, tag = 'scoped memory for tpu_custom_call.1']
    #allocation4 [shape = 's32[1]{0}', space=sflag, size = 0x4, scoped, tag = 'scoped memory for tpu_custom_call.1']
    #allocation5 [shape = 'u8[65536]{0}', space=vmem, size = 0x10000, scoped, tag = 'output window, operand 0, single buffered']
    %10 = vsyncpa [#allocation3], 0
    %11 = vsyncpa [#allocation4], 0
    // Predicated region
    $region2: #{tpu_custom_call.1} parent=1 // pred_check
      _
    $region3: #{tpu_custom_call.1} parent=1 // pred_check_branch
      %13 = sbr.rel (0) target = $region5
    $region4: #{tpu_custom_call.1} parent=1 // pred_region
      %15 = vsyncadd [#allocation3], 0
      %s16 = sshll.u32 %s0, 4
      %s17 = int_to_ptr.hbm [resolvable:$true] %s16
      %s18 = sshll.u32 [#allocation2], 4
      %s19 = int_to_ptr.vmem [resolvable:$true] %s18
      %24 = dma.hbm_to_vmem [thread:$0]  %s17, 2048, %s19, [#allocation3], 256, 256, 16
    $region5: #{tpu_custom_call.1} parent=1 // pred_fallthru
      _
    // Predicated region
    $region6: #{tpu_custom_call.1} parent=1 // pred_check
      _
    $region7: #{tpu_custom_call.1} parent=1 // pred_check_branch
      %26 = sbr.rel (0) target = $region9
    $region8: #{tpu_custom_call.1} parent=1 // pred_region
      _
    $region9: #{tpu_custom_call.1} parent=1 // pred_fallthru
      _
    // Predicated region
    $region10: #{tpu_custom_call.1} parent=1 // pred_check
      _
    $region11: #{tpu_custom_call.1} parent=1 // pred_check_branch
      %28 = sbr.rel (0) target = $region13
    $region12: #{tpu_custom_call.1} parent=1 // pred_region
      _
    $region13: #{tpu_custom_call.1} parent=1 // pred_fallthru
      _
    // Predicated region
    $region14: #{tpu_custom_call.1} parent=1 // pred_check
      _
    $region15: #{tpu_custom_call.1} parent=1 // pred_check_branch
      %30 = sbr.rel (0) target = $region17
    $region16: #{tpu_custom_call.1} parent=1 // pred_region
      _
    $region17: #{tpu_custom_call.1} parent=1 // pred_fallthru
      _
    // Predicated region
    $region18: #{tpu_custom_call.1} parent=1 // pred_check
      _
    $region19: #{tpu_custom_call.1} parent=1 // pred_check_branch
      %32 = sbr.rel (0) target = $region21
    $region20: #{tpu_custom_call.1} parent=1 // pred_region
      _
    $region21: #{tpu_custom_call.1} parent=1 // pred_fallthru
      _
    // Predicated region
    $region22: #{tpu_custom_call.1} parent=1 // pred_check
      _
    $region23: #{tpu_custom_call.1} parent=1 // pred_check_branch
      %34 = sbr.rel (0) target = $region25
    $region24: #{tpu_custom_call.1} parent=1 // pred_region
      %36 = dma.done [#allocation3], 2048
    $region25: #{tpu_custom_call.1} parent=1 // pred_fallthru
      _
    %v37 = vld [vmem:[#allocation2] sm:$0xff]
    %v38 = vld [vmem:[#allocation2 + $0x8] sm:$0xff]
    %v39 = vld [vmem:[#allocation2 + $0x10] sm:$0xff]
    %v40 = vld [vmem:[#allocation2 + $0x18] sm:$0xff]
    %v41 = vld [vmem:[#allocation2 + $0x20] sm:$0xff]
    %v42 = vld [vmem:[#allocation2 + $0x28] sm:$0xff]
    %v43 = vld [vmem:[#allocation2 + $0x30] sm:$0xff]
    %v44 = vld [vmem:[#allocation2 + $0x38] sm:$0xff]
    %v45 = vld [vmem:[#allocation2 + $0x40] sm:$0xff]
    %v46 = vld [vmem:[#allocation2 + $0x48] sm:$0xff]
    %v47 = vld [vmem:[#allocation2 + $0x50] sm:$0xff]
    %v48 = vld [vmem:[#allocation2 + $0x58] sm:$0xff]
    %v49 = vld [vmem:[#allocation2 + $0x60] sm:$0xff]
    %v50 = vld [vmem:[#allocation2 + $0x68] sm:$0xff]
    %v51 = vld [vmem:[#allocation2 + $0x70] sm:$0xff]
    %v52 = vld [vmem:[#allocation2 + $0x78] sm:$0xff]
    %v53 = vadd.f32 %v37, %v38
    %54 = vadd.xlane.f32.xlu0 %v53
    %v55 = vpop.xlane.xlu0 %54
    %v56 = vadd.f32 %v39, %v40
    %57 = vadd.xlane.f32.xlu0 %v56
    %v58 = vpop.xlane.xlu0 %57
    %v59 = vadd.f32 %v41, %v42
    %60 = vadd.xlane.f32.xlu0 %v59
    %v61 = vpop.xlane.xlu0 %60
    %v62 = vadd.f32 %v43, %v44
    %63 = vadd.xlane.f32.xlu0 %v62
    %v64 = vpop.xlane.xlu0 %63
    %v65 = vadd.f32 %v45, %v46
    %66 = vadd.xlane.f32.xlu0 %v65
    %v67 = vpop.xlane.xlu0 %66
    %v68 = vadd.f32 %v47, %v48
    %69 = vadd.xlane.f32.xlu0 %v68
    %v70 = vpop.xlane.xlu0 %69
    %v71 = vadd.f32 %v49, %v50
    %72 = vadd.xlane.f32.xlu0 %v71
    %v73 = vpop.xlane.xlu0 %72
    %v74 = vadd.f32 %v51, %v52
    %75 = vadd.xlane.f32.xlu0 %v74
    %v76 = vpop.xlane.xlu0 %75
    %v77 = vld [vmem:[%s1] sm:$0xff]
    %v78 = vld [vmem:[%s1 + $0x8] sm:$0xff]
    %v79 = vld [vmem:[%s1 + $0x10] sm:$0xff]
    %v80 = vld [vmem:[%s1 + $0x18] sm:$0xff]
    %v81 = vld [vmem:[%s2] sm:$0x1]
    %v83 = vperm.slane %v81, 0
    %v93 = vlaneseq
    %v94 = vand.u32 %v93, 127
    %v95 = vperm.slane %v55, %v94
    %v96 = vadd.s32 %v94, 4294967288
    %v97 = vperm.slane %v58, %v96
    %vm98 = vcmask 130112
    %v99 = vsel %vm98, %v97, %v95
    %v100 = vadd.s32 %v94, 4294967280
    %v101 = vperm.slane %v61, %v100
    %vm102 = vcmask 195712
    %v103 = vsel %vm102, %v101, %v99
    %v104 = vadd.s32 %v94, 4294967272
    %v105 = vperm.slane %v64, %v104
    %vm106 = vcmask 261312
    %v107 = vsel %vm106, %v105, %v103
    %v108 = vperm.slane %v67, %v94
    %v109 = vperm.slane %v70, %v96
    %v110 = vsel %vm98, %v109, %v108
    %v111 = vperm.slane %v73, %v100
    %v112 = vsel %vm102, %v111, %v110
    %v113 = vperm.slane %v76, %v104
    %v114 = vsel %vm106, %v113, %v112
    %vm115 = vcmask 1041409
    %v116 = vsel %vm115, %v114, %v107
    %vm117 = vcmask 261120
    %v118 = vsel %vm117, %v116, 0
    %120 = vmatpush.msra.mxu0 0.0
    %121 = vmatpush.msra.mxu0 0.0
    %122 = vmatpush.msra.mxu0 0.0
    %123 = vmatpush.msra.mxu0 0.0
    %124 = vmatpush.msra.mxu0 0.0
    %125 = vmatpush.msra.mxu0 0.0
    %126 = vmatpush.msra.mxu0 0.0
    %127 = vmatpush.msra.mxu0 0.0
    %128 = vmatpush.msra.mxu0 0.0
    %129 = vmatpush.msra.mxu0 0.0
    %130 = vmatpush.msra.mxu0 0.0
    %131 = vmatpush.msra.mxu0 0.0
    %132 = vmatpush.msra.mxu0 %v80
    %133 = vmatpush.msra.mxu0 %v79
    %134 = vmatpush.msra.mxu0 %v78
    %135 = vmatpush.msra.mxu0 %v77
    %136 = vmatmul.f32.gmra.mxu0 %v118
    %v137 = vpop.f32.mrf.mxu0
    %v138 = vadd.f32 %v83, %v137
    %139 = vdwg.mxu0
    %v140 = vmax.f32 %v138, 0.0
    %v141 = vld [vmem:[%s3] sm:$0x3]
    %v142 = vld [vmem:[%s4] sm:$0x1]
    %v144 = vperm.slane %v142, 0
    %vm146 = vcmask 15360
    %v148 = vsel %vm146, %v140, 0
    %vm150 = vcmask 1041408
    %v152 = vsel %vm150, %v141, 0
    %154 = vmatpush.msra.mxu0 0.0
    %155 = vmatpush.msra.mxu0 0.0
    %156 = vmatpush.msra.mxu0 0.0
    %157 = vmatpush.msra.mxu0 0.0
    %158 = vmatpush.msra.mxu0 0.0
    %159 = vmatpush.msra.mxu0 0.0
    %160 = vmatpush.msra.mxu0 0.0
    %161 = vmatpush.msra.mxu0 0.0
    %162 = vmatpush.msra.mxu0 0.0
    %163 = vmatpush.msra.mxu0 0.0
    %164 = vmatpush.msra.mxu0 0.0
    %165 = vmatpush.msra.mxu0 0.0
    %166 = vmatpush.msra.mxu0 0.0
    %167 = vmatpush.msra.mxu0 0.0
    %168 = vmatpush.msra.mxu0 0.0
    %169 = vmatpush.msra.mxu0 %v152
    %170 = vmatmul.f32.gmra.mxu0 %v148
    %v171 = vpop.f32.mrf.mxu0
    %v172 = vadd.f32 %v144, %v171
    %173 = vdwg.mxu0
    %v174 = vxor.u32 %v172, 2147483648
    %v175 = vmul.f32 %v174, 1.442695
    %v176 = vpow.pop %v175
    %v177 = vadd.f32 %v176, 1.0
    %v178 = vrcp.pop %v177
    %v179 = vmul.f32 %v177, %v178
    %v180 = vsub.f32 1.0, %v179
    %v181 = vmul.f32 %v178, %v180
    %v182 = vadd.f32 %v178, %v181
    %vm183 = vweird.f32 %v177
    %vm184 = vweird.f32 %v178
    %vm185 = vmor %vm183, %vm184
    %v186 = vsel %vm185, %v178, %v182
    %v187 = vand.u32 2147483647, %v177
    %vm188 = vcmp.eq.f32.partialorder %v187, 8.507059e+37
    %v189 = vand.u32 %v177, 2147483648
    %v190 = vor.u32 1.1754944e-38, %v189
    %v191 = vsel %vm188, %v190, %v186
    %v192 = vmul.f32 1.0, %v191
    %v193 = vperm.slane %v192, 0
    %v194 = vlaneseq
    %v195 = vshrl.u32 %v194, 7
    %197 = vset.pattern.permute.xlu0 %v195
    %198 = vperm.xlu0 %197, %v193
    %v199 = vpop.permute.xlu0 %198
    %v200 = vlaneseq
    %v201 = vshrl.u32 %v200, 7
    %v202 = vadd.s32 %v201, 8
    %203 = vset.pattern.permute.xlu0 %v202
    %204 = vperm.xlu0 %203, %v193
    %v205 = vpop.permute.xlu0 %204
    %v206 = vlaneseq
    %v207 = vshrl.u32 %v206, 7
    %v208 = vadd.s32 %v207, 16
    %209 = vset.pattern.permute.xlu0 %v208
    %210 = vperm.xlu0 %209, %v193
    %v211 = vpop.permute.xlu0 %210
    %v212 = vlaneseq
    %v213 = vshrl.u32 %v212, 7
    %v214 = vadd.s32 %v213, 24
    %215 = vset.pattern.permute.xlu0 %v214
    %216 = vperm.xlu0 %215, %v193
    %v217 = vpop.permute.xlu0 %216
    %v218 = vperm.slane %v192, 1
    %v219 = vlaneseq
    %v220 = vshrl.u32 %v219, 7
    %222 = vset.pattern.permute.xlu0 %v220
    %223 = vperm.xlu0 %222, %v218
    %v224 = vpop.permute.xlu0 %223
    %v225 = vlaneseq
    %v226 = vshrl.u32 %v225, 7
    %v227 = vadd.s32 %v226, 8
    %228 = vset.pattern.permute.xlu0 %v227
    %229 = vperm.xlu0 %228, %v218
    %v230 = vpop.permute.xlu0 %229
    %v231 = vlaneseq
    %v232 = vshrl.u32 %v231, 7
    %v233 = vadd.s32 %v232, 16
    %234 = vset.pattern.permute.xlu0 %v233
    %235 = vperm.xlu0 %234, %v218
    %v236 = vpop.permute.xlu0 %235
    %v237 = vlaneseq
    %v238 = vshrl.u32 %v237, 7
    %v239 = vadd.s32 %v238, 24
    %240 = vset.pattern.permute.xlu0 %v239
    %241 = vperm.xlu0 %240, %v218
    %v242 = vpop.permute.xlu0 %241
    %v243 = vmul.f32 %v37, %v199
    %v244 = vmul.f32 %v38, %v199
    %v245 = vmul.f32 %v39, %v205
    %v246 = vmul.f32 %v40, %v205
    %v247 = vmul.f32 %v41, %v211
    %v248 = vmul.f32 %v42, %v211
    %v249 = vmul.f32 %v43, %v217
    %v250 = vmul.f32 %v44, %v217
    %v251 = vmul.f32 %v45, %v224
    %v252 = vmul.f32 %v46, %v224
    %v253 = vmul.f32 %v47, %v230
    %v254 = vmul.f32 %v48, %v230
    %v255 = vmul.f32 %v49, %v236
    %v256 = vmul.f32 %v50, %v236
    %v257 = vmul.f32 %v51, %v242
    %v258 = vmul.f32 %v52, %v242
    %259 = vst [vmem:[#allocation5] sm:$0xff] %v243
    %260 = vst [vmem:[#allocation5 + $0x8] sm:$0xff] %v244
    %261 = vst [vmem:[#allocation5 + $0x10] sm:$0xff] %v245
    %262 = vst [vmem:[#allocation5 + $0x18] sm:$0xff] %v246
    %263 = vst [vmem:[#allocation5 + $0x20] sm:$0xff] %v247
    %264 = vst [vmem:[#allocation5 + $0x28] sm:$0xff] %v248
    %265 = vst [vmem:[#allocation5 + $0x30] sm:$0xff] %v249
    %266 = vst [vmem:[#allocation5 + $0x38] sm:$0xff] %v250
    %267 = vst [vmem:[#allocation5 + $0x40] sm:$0xff] %v251
    %268 = vst [vmem:[#allocation5 + $0x48] sm:$0xff] %v252
    %269 = vst [vmem:[#allocation5 + $0x50] sm:$0xff] %v253
    %270 = vst [vmem:[#allocation5 + $0x58] sm:$0xff] %v254
    %271 = vst [vmem:[#allocation5 + $0x60] sm:$0xff] %v255
    %272 = vst [vmem:[#allocation5 + $0x68] sm:$0xff] %v256
    %273 = vst [vmem:[#allocation5 + $0x70] sm:$0xff] %v257
    %274 = vst [vmem:[#allocation5 + $0x78] sm:$0xff] %v258
    // Predicated region
    $region26: #{tpu_custom_call.1} parent=1 // pred_check
      _
    $region27: #{tpu_custom_call.1} parent=1 // pred_check_branch
      %276 = sbr.rel (0) target = $region29
    $region28: #{tpu_custom_call.1} parent=1 // pred_region
      %278 = vsyncadd [#allocation4], 0
      %s279 = sshll.u32 [#allocation5], 4
      %s280 = int_to_ptr.vmem [resolvable:$true] %s279
      %s281 = sshll.u32 %s5, 4
      %s282 = int_to_ptr.hbm [resolvable:$true] %s281
      %287 = dma.vmem_to_hbm [thread:$0]  %s280, 2048, %s282, [#allocation4], 256, 256, 16
    $region29: #{tpu_custom_call.1} parent=1 // pred_fallthru
      _
    // Predicated region
    $region30: #{tpu_custom_call.1} parent=1 // pred_check
      _
    $region31: #{tpu_custom_call.1} parent=1 // pred_check_branch
      %289 = sbr.rel (0) target = $region33
    $region32: #{tpu_custom_call.1} parent=1 // pred_region
      %291 = dma.done [#allocation4], 2048
    $region33: #{tpu_custom_call.1} parent=1 // pred_fallthru
      _
    %292 = vsyncpa [#allocation3], 1
    %293 = vsyncpa [#allocation4], 1

</llo_original>
